<compile_context>
chip_gen: v5e
topology: v5e:2x2
jax: 0.10.0
libtpu: 0.0.40
codegen_flags: <defaults>
</compile_context>

<pallas_src>
import jax
import jax.numpy as jnp
from jax import lax
from jax.experimental import pallas as pl
from jax.experimental.pallas import tpu as pltpu


# -------------------- fused cross-entropy kernel --------------------
def _make_fused_ce_kernel(n_logits):
    """Kernel over blocks (1, C, T); accumulates per-pixel loss into out refs."""

    def kernel(labels_ref, *rest):
        logits_refs = rest[:n_logits]
        out_refs = rest[n_logits:]
        j = pl.program_id(1)

        labels = labels_ref[...]                                   # (1, 1, T) int32

        @pl.when(j == 0)
        def _():
            for out_ref in out_refs:
                out_ref[...] = jnp.zeros_like(out_ref)

        for logits_ref, out_ref in zip(logits_refs, out_refs):
            logits = logits_ref[...].astype(jnp.float32)           # (1, C, T)
            # log-softmax over the class (sublane) axis.
            m = jnp.max(logits, axis=1, keepdims=True)             # (1, 1, T)
            lse = m + jnp.log(
                jnp.sum(jnp.exp(logits - m), axis=1, keepdims=True))
            # pick logits at label via one-hot compare (iota along class axis).
            cls_idx = lax.broadcasted_iota(jnp.int32, logits.shape, 1)
            onehot = (cls_idx == labels).astype(jnp.float32)
            picked = jnp.sum(logits * onehot, axis=1, keepdims=True)
            # lane-partial accumulation; scalar collapse happens in the wrapper.
            out_ref[...] += lse - picked

    return kernel


def _pick_hw_tile(hw, max_tile=4096):
    """Largest pixel tile <= max_tile that is a multiple of 128 and divides hw
    (or the full pixel axis if hw is small / awkward)."""
    if hw <= max_tile:
        return hw
    t = (max_tile // 128) * 128
    while t >= 128:
        if hw % t == 0:
            return t
        t -= 128
    return hw  # fallback: single block over the whole pixel axis


def fused_cross_entropy_means(logits_list, labels_nhw, *, max_tile_hw=4096):
    """Mean cross-entropy (torch CrossEntropyLoss, mean reduction) over NCHW
    logits and NHW integer labels, for 1 or 2 logits tensors in one kernel."""
    n_logits = len(logits_list)
    n, c, h, w = logits_list[0].shape
    hw = h * w
    for lg in logits_list:
        assert lg.shape == (n, c, h, w)

    tile = _pick_hw_tile(hw, max_tile_hw)
    n_tiles = hw // tile

    # Pure views (no HBM transpose).
    logits3d = [lg.reshape(n, c, hw) for lg in logits_list]
    labels3d = labels_nhw.reshape(n, 1, hw).astype(jnp.int32)

    logits_spec = pl.BlockSpec((1, c, tile), lambda i, j: (i, 0, j))
    labels_spec = pl.BlockSpec((1, 1, tile), lambda i, j: (i, 0, j))
    # Output block is constant along j => resident accumulator across the
    # pixel-tile reduction axis; one (1, 1, tile) slab per batch row.
    out_spec = pl.BlockSpec((1, 1, tile), lambda i, j: (i, 0, 0))

    out_shapes = tuple(
        jax.ShapeDtypeStruct((n, 1, tile), jnp.float32) for _ in range(n_logits))

    partials = pl.pallas_call(
        _make_fused_ce_kernel(n_logits),
        out_shape=out_shapes,
        grid_spec=pltpu.PrefetchScalarGridSpec(
            num_scalar_prefetch=0,
            grid=(n, n_tiles),
            in_specs=[labels_spec] + [logits_spec] * n_logits,
            out_specs=tuple(out_spec for _ in range(n_logits)),
        ),
        compiler_params=pltpu.CompilerParams(
            dimension_semantics=("parallel", "arbitrary")),
    )(labels3d, *logits3d)

    if not isinstance(partials, (list, tuple)):
        partials = (partials,)

    inv_rows = 1.0 / float(n * hw)
    return tuple(jnp.sum(p) * inv_rows for p in partials)


# -------------------- softmax + entropy (plain jnp; too tiny for a kernel) ----
def softmax_entropy(branch_weights):
    eps = jnp.float32(1e-8)
    soft = jax.nn.softmax(branch_weights.astype(jnp.float32), axis=0)
    norm = soft / (jnp.sum(soft) + eps)
    return -jnp.sum(norm * jnp.log2(norm + eps))


# -------------------- the loss module --------------------
class DynamicEnsembleLossProgressEntropy:
    def __init__(self, max_alpha=0.3, max_beta=0.1, max_loss_estimate=3.0,
                 use_area_loss=True, warmup_epochs=0, transition_epochs=5,
                 loss_global_based=False):
        self.max_alpha = max_alpha
        self.max_beta = max_beta
        self.max_loss_estimate = max_loss_estimate
        self.use_area_loss = use_area_loss
        self.warmup_epochs = warmup_epochs
        self.transition_epochs = transition_epochs
        self.loss_global_based = loss_global_based
        self.epoch = 0

    def step_epoch(self):
        self.epoch += 1

    def __call__(self, outputs, labels):
        # TODO(synk): nn.CrossEntropyLoss ignore_index (-100) is not handled;
        # labels are assumed to be valid class indices.
        if 'distill_teacher' in outputs:
            loss_fused, loss_global = fused_cross_entropy_means(
                [outputs['out'], outputs['distill_teacher']], labels)
        else:
            (loss_fused,) = fused_cross_entropy_means([outputs['out']], labels)
            loss_global = jnp.float32(0.0)

        # torch used loss_fused.item() under no_grad -> detached scalar.
        loss_factor = 1.0 - jnp.minimum(
            lax.stop_gradient(loss_fused) / self.max_loss_estimate, 1.0)

        progress = min(1.0, max(0.0, (self.epoch - self.warmup_epochs)
                                / self.transition_epochs))
        fused_weight = 0.5 + 0.5 * progress
        global_weight = 1.0 - fused_weight
        loss_total = fused_weight * loss_fused + global_weight * loss_global

        alpha = 0
        beta = self.max_beta * loss_factor * progress if self.use_area_loss else 0.0
        gamma = 0
        loss_entropy = jnp.float32(0.0)
        loss_diversity = jnp.float32(0.0)

        if progress > 0.0:
            if (self.use_area_loss and 'area_logits' in outputs
                    and outputs['area_logits'] is not None):
                if ('branch_weights_tensor' in outputs
                        and outputs['branch_weights_tensor'] is not None):
                    loss_entropy = softmax_entropy(outputs['branch_weights_tensor'])
                else:
                    loss_entropy = jnp.float32(0.0)
                loss_total = loss_total + beta * loss_entropy

        return {
            'loss': loss_total,
            'loss_fused': lax.stop_gradient(loss_fused),
            'loss_global': lax.stop_gradient(loss_global),
            'loss_entropy': lax.stop_gradient(loss_entropy),
            'loss_diversity': lax.stop_gradient(loss_diversity),
            'alpha': alpha,
            'beta': beta,
            'gamma': gamma,
            'fused_weight': fused_weight,
            'progress': progress,
        }


# -------------------- pure-JAX reference (sanity check) --------------------
def _ce_ref(logits_nchw, labels_nhw):
    n, c, h, w = logits_nchw.shape
    lg = jnp.transpose(logits_nchw, (0, 2, 3, 1)).reshape(-1, c).astype(jnp.float32)
    lb = labels_nhw.reshape(-1)
    logp = jax.nn.log_softmax(lg, axis=-1)
    return -jnp.mean(jnp.take_along_axis(logp, lb[:, None], axis=-1))


if __name__ == "__main__":
    key = jax.random.PRNGKey(0)
    k1, k2, k3, k4, k5 = jax.random.split(key, 5)

    N, C, H, W = 2, 4, 16, 16   # batch=2, classes=4, spatial=16
    K = 4                       # number of ensemble branches

    out_logits = jax.random.normal(k1, (N, C, H, W), dtype=jnp.float32)
    teacher_logits = jax.random.normal(k2, (N, C, H, W), dtype=jnp.float32)
    area_logits = jax.random.normal(k3, (N, K, H, W), dtype=jnp.float32)
    branch_weights = jax.random.normal(k4, (K,), dtype=jnp.float32)
    labels = jax.random.randint(k5, (N, H, W), 0, C, dtype=jnp.int32)

    outputs = {
        'out': out_logits,
        'distill_teacher': teacher_logits,
        'area_logits': area_logits,
        'branch_weights_tensor': branch_weights,
    }

    loss_mod = DynamicEnsembleLossProgressEntropy()
    # advance a few epochs so progress > 0 and the entropy path is exercised
    for _ in range(3):
        loss_mod.step_epoch()

    result = loss_mod(outputs, labels)
    result = jax.tree_util.tree_map(
        lambda x: jax.block_until_ready(x) if isinstance(x, jax.Array) else x,
        result)

    # numerical sanity check of the fused Pallas cross-entropy kernel
    ref_fused = _ce_ref(out_logits, labels)
    ref_global = _ce_ref(teacher_logits, labels)
    assert abs(float(result['loss_fused']) - float(ref_fused)) < 1e-4, \
        (float(result['loss_fused']), float(ref_fused))
    assert abs(float(result['loss_global']) - float(ref_global)) < 1e-4, \
        (float(result['loss_global']), float(ref_global))

    print("KERNEL_OK")
</pallas_src>

<mosaic_0001>
module attributes {stable_mosaic.version = 11 : i64} {
  func.func @kernel(%arg0: i32, %arg1: i32, %arg2: memref<1x1x256xi32, #tpu.memory_space<vmem>>, %arg3: memref<1x4x256xf32, #tpu.memory_space<vmem>>, %arg4: memref<1x4x256xf32, #tpu.memory_space<vmem>>, %arg5: memref<1x1x256xf32, #tpu.memory_space<vmem>>, %arg6: memref<1x1x256xf32, #tpu.memory_space<vmem>>) attributes {dimension_semantics = [#tpu.dimension_semantics<parallel>, #tpu.dimension_semantics<arbitrary>], iteration_bounds = array<i64: 2, 1>, scalar_prefetch = 0 : i64, scratch_operands = 0 : i64, tpu.core_type = #tpu.core_type<tc>, window_params = [{transform_indices = @transform_0, window_bounds = array<i64: 1, 1, 256>}, {transform_indices = @transform_1, window_bounds = array<i64: 1, 4, 256>}, {transform_indices = @transform_2, window_bounds = array<i64: 1, 4, 256>}, {transform_indices = @transform_3, window_bounds = array<i64: 1, 1, 256>}, {transform_indices = @transform_4, window_bounds = array<i64: 1, 1, 256>}]} {
    %c0 = arith.constant 0 : index
    %c0_0 = arith.constant 0 : index
    %c0_1 = arith.constant 0 : index
    %0 = vector.load %arg2[%c0, %c0_0, %c0_1] : memref<1x1x256xi32, #tpu.memory_space<vmem>>, vector<1x1x256xi32>
    %c0_i32 = arith.constant 0 : i32
    %1 = arith.cmpi eq, %arg1, %c0_i32 : i32
    %2 = arith.extui %1 : i1 to i32
    %c0_i32_2 = arith.constant 0 : i32
    %3 = arith.cmpi ne, %2, %c0_i32_2 : i32
    scf.if %3 {
      %cst_26 = arith.constant 0.000000e+00 : f32
      %48 = vector.broadcast %cst_26 : f32 to vector<1x1x256xf32>
      %c0_27 = arith.constant 0 : index
      %c0_28 = arith.constant 0 : index
      %c0_29 = arith.constant 0 : index
      %49 = vector.load %arg5[%c0_27, %c0_28, %c0_29] : memref<1x1x256xf32, #tpu.memory_space<vmem>>, vector<1x1x256xf32>
      tpu.vector_store %arg5[%c0_27, %c0_28, %c0_29], %48 {strides = array<i32>} : memref<1x1x256xf32, #tpu.memory_space<vmem>>, vector<1x1x256xf32>,
      %cst_30 = arith.constant 0.000000e+00 : f32
      %50 = vector.broadcast %cst_30 : f32 to vector<1x1x256xf32>
      %c0_31 = arith.constant 0 : index
      %c0_32 = arith.constant 0 : index
      %c0_33 = arith.constant 0 : index
      %51 = vector.load %arg6[%c0_31, %c0_32, %c0_33] : memref<1x1x256xf32, #tpu.memory_space<vmem>>, vector<1x1x256xf32>
      tpu.vector_store %arg6[%c0_31, %c0_32, %c0_33], %50 {strides = array<i32>} : memref<1x1x256xf32, #tpu.memory_space<vmem>>, vector<1x1x256xf32>,
    } else {
    }
    %c0_3 = arith.constant 0 : index
    %c0_4 = arith.constant 0 : index
    %c0_5 = arith.constant 0 : index
    %4 = vector.load %arg3[%c0_3, %c0_4, %c0_5] : memref<1x4x256xf32, #tpu.memory_space<vmem>>, vector<1x4x256xf32>
    %cst = arith.constant dense<0xFF800000> : vector<1x256xf32>
    %5 = vector.multi_reduction <maximumf>, %4, %cst [1] : vector<1x4x256xf32> to vector<1x256xf32>
    %6 = vector.shape_cast %5 : vector<1x256xf32> to vector<1x1x256xf32>
    %7 = vector.broadcast %6 : vector<1x1x256xf32> to vector<1x4x256xf32>
    %8 = arith.subf %4, %7 : vector<1x4x256xf32>
    %9 = math.exp %8 : vector<1x4x256xf32>
    %cst_6 = arith.constant dense<0.000000e+00> : vector<1x256xf32>
    %10 = vector.multi_reduction <add>, %9, %cst_6 [1] : vector<1x4x256xf32> to vector<1x256xf32>
    %11 = vector.shape_cast %10 : vector<1x256xf32> to vector<1x1x256xf32>
    %12 = math.log %11 : vector<1x1x256xf32>
    %13 = arith.addf %6, %12 : vector<1x1x256xf32>
    %14 = tpu.iota {dimensions = array<i32: 1>} : vector<1x4x256xi32>
    %15 = vector.broadcast %0 : vector<1x1x256xi32> to vector<1x4x256xi32>
    %16 = arith.cmpi eq, %14, %15 : vector<1x4x256xi32>
    %17 = arith.extui %16 : vector<1x4x256xi1> to vector<1x4x256xi32>
    %18 = arith.sitofp %17 : vector<1x4x256xi32> to vector<1x4x256xf32>
    %19 = arith.mulf %4, %18 : vector<1x4x256xf32>
    %cst_7 = arith.constant dense<0.000000e+00> : vector<1x256xf32>
    %20 = vector.multi_reduction <add>, %19, %cst_7 [1] : vector<1x4x256xf32> to vector<1x256xf32>
    %21 = vector.shape_cast %20 : vector<1x256xf32> to vector<1x1x256xf32>
    %c0_8 = arith.constant 0 : index
    %c0_9 = arith.constant 0 : index
    %c0_10 = arith.constant 0 : index
    %22 = vector.load %arg5[%c0_8, %c0_9, %c0_10] : memref<1x1x256xf32, #tpu.memory_space<vmem>>, vector<1x1x256xf32>
    %23 = arith.subf %13, %21 : vector<1x1x256xf32>
    %24 = arith.addf %22, %23 : vector<1x1x256xf32>
    %c0_11 = arith.constant 0 : index
    %c0_12 = arith.constant 0 : index
    %c0_13 = arith.constant 0 : index
    %25 = vector.load %arg5[%c0_11, %c0_12, %c0_13] : memref<1x1x256xf32, #tpu.memory_space<vmem>>, vector<1x1x256xf32>
    tpu.vector_store %arg5[%c0_11, %c0_12, %c0_13], %24 {strides = array<i32>} : memref<1x1x256xf32, #tpu.memory_space<vmem>>, vector<1x1x256xf32>,
    %c0_14 = arith.constant 0 : index
    %c0_15 = arith.constant 0 : index
    %c0_16 = arith.constant 0 : index
    %26 = vector.load %arg4[%c0_14, %c0_15, %c0_16] : memref<1x4x256xf32, #tpu.memory_space<vmem>>, vector<1x4x256xf32>
    %cst_17 = arith.constant dense<0xFF800000> : vector<1x256xf32>
    %27 = vector.multi_reduction <maximumf>, %26, %cst_17 [1] : vector<1x4x256xf32> to vector<1x256xf32>
    %28 = vector.shape_cast %27 : vector<1x256xf32> to vector<1x1x256xf32>
    %29 = vector.broadcast %28 : vector<1x1x256xf32> to vector<1x4x256xf32>
    %30 = arith.subf %26, %29 : vector<1x4x256xf32>
    %31 = math.exp %30 : vector<1x4x256xf32>
    %cst_18 = arith.constant dense<0.000000e+00> : vector<1x256xf32>
    %32 = vector.multi_reduction <add>, %31, %cst_18 [1] : vector<1x4x256xf32> to vector<1x256xf32>
    %33 = vector.shape_cast %32 : vector<1x256xf32> to vector<1x1x256xf32>
    %34 = math.log %33 : vector<1x1x256xf32>
    %35 = arith.addf %28, %34 : vector<1x1x256xf32>
    %36 = tpu.iota {dimensions = array<i32: 1>} : vector<1x4x256xi32>
    %37 = vector.broadcast %0 : vector<1x1x256xi32> to vector<1x4x256xi32>
    %38 = arith.cmpi eq, %36, %37 : vector<1x4x256xi32>
    %39 = arith.extui %38 : vector<1x4x256xi1> to vector<1x4x256xi32>
    %40 = arith.sitofp %39 : vector<1x4x256xi32> to vector<1x4x256xf32>
    %41 = arith.mulf %26, %40 : vector<1x4x256xf32>
    %cst_19 = arith.constant dense<0.000000e+00> : vector<1x256xf32>
    %42 = vector.multi_reduction <add>, %41, %cst_19 [1] : vector<1x4x256xf32> to vector<1x256xf32>
    %43 = vector.shape_cast %42 : vector<1x256xf32> to vector<1x1x256xf32>
    %c0_20 = arith.constant 0 : index
    %c0_21 = arith.constant 0 : index
    %c0_22 = arith.constant 0 : index
    %44 = vector.load %arg6[%c0_20, %c0_21, %c0_22] : memref<1x1x256xf32, #tpu.memory_space<vmem>>, vector<1x1x256xf32>
    %45 = arith.subf %35, %43 : vector<1x1x256xf32>
    %46 = arith.addf %44, %45 : vector<1x1x256xf32>
    %c0_23 = arith.constant 0 : index
    %c0_24 = arith.constant 0 : index
    %c0_25 = arith.constant 0 : index
    %47 = vector.load %arg6[%c0_23, %c0_24, %c0_25] : memref<1x1x256xf32, #tpu.memory_space<vmem>>, vector<1x1x256xf32>
    tpu.vector_store %arg6[%c0_23, %c0_24, %c0_25], %46 {strides = array<i32>} : memref<1x1x256xf32, #tpu.memory_space<vmem>>, vector<1x1x256xf32>,
    return
  }
  func.func @transform_0(%arg0: i32, %arg1: i32) -> (i32, i32, i32) {
    %c0_i32 = arith.constant 0 : i32
    %c0_i32_0 = arith.constant 0 : i32
    return %arg0, %c0_i32, %arg1 : i32, i32, i32
  }
  func.func @transform_1(%arg0: i32, %arg1: i32) -> (i32, i32, i32) {
    %c0_i32 = arith.constant 0 : i32
    %c0_i32_0 = arith.constant 0 : i32
    return %arg0, %c0_i32, %arg1 : i32, i32, i32
  }
  func.func @transform_2(%arg0: i32, %arg1: i32) -> (i32, i32, i32) {
    %c0_i32 = arith.constant 0 : i32
    %c0_i32_0 = arith.constant 0 : i32
    return %arg0, %c0_i32, %arg1 : i32, i32, i32
  }
  func.func @transform_3(%arg0: i32, %arg1: i32) -> (i32, i32, i32) {
    %c0_i32 = arith.constant 0 : i32
    %c0_i32_0 = arith.constant 0 : i32
    %c0_i32_1 = arith.constant 0 : i32
    return %arg0, %c0_i32, %c0_i32_0 : i32, i32, i32
  }
  func.func @transform_4(%arg0: i32, %arg1: i32) -> (i32, i32, i32) {
    %c0_i32 = arith.constant 0 : i32
    %c0_i32_0 = arith.constant 0 : i32
    %c0_i32_1 = arith.constant 0 : i32
    return %arg0, %c0_i32, %c0_i32_0 : i32, i32, i32
  }
}

</mosaic_0001>

<llo_original>
// kernel: tpu_custom_call.1
$region0: #{tpu_custom_call.1}
  #allocation0 [shape = 'u32[]', space=smem, size = 0x4, offset = 0x4, fixed_abs, tag = 'smem constant byte address 0x4 - core index']
  #allocation1 [shape = 'u32[72,128]{1,0:T(1,128)}', space=vmem, size = 0x9000, scoped, tag = 'internal scratch']
  %s0 = inlined_call_operand.hbm [shape: s32[2,1,256], index: 0, kind: input, shape index: {}]
  %s1 = inlined_call_operand.hbm [shape: f32[2,4,256], index: 1, kind: input, shape index: {}]
  %s2 = inlined_call_operand.hbm [shape: f32[2,4,256], index: 2, kind: input, shape index: {}]
  %s3 = inlined_call_operand.hbm [shape: f32[2,1,256], index: 3, kind: output, shape index: {0}]
  %s4 = inlined_call_operand.hbm [shape: f32[2,1,256], index: 4, kind: output, shape index: {1}]
  %5 = xla_tuple %s3, %s4
  %s6 = sld [smem:[#allocation0]]
  $region69: #{tpu_custom_call.1} parent=0
    _
  %s8 = ssub.s32 1, %s6
  %s9 = scalar_select 0, %s8, %s6
  $region1: #{tpu_custom_call.1} parent=0
    #allocation2 [shape = 'u8[2048]{0}', space=vmem, size = 0x800, scoped, tag = 'input window, operand 0']
    #allocation3 [shape = 's32[2]{0}', space=sflag, size = 0x8, scoped, tag = 'scoped memory for tpu_custom_call.1']
    #allocation4 [shape = 's32[2]{0}', space=sflag, size = 0x8, scoped, tag = 'scoped memory for tpu_custom_call.1']
    #allocation5 [shape = 'u8[8192]{0}', space=vmem, size = 0x2000, scoped, tag = 'input window, operand 1']
    #allocation6 [shape = 's32[2]{0}', space=sflag, size = 0x8, scoped, tag = 'scoped memory for tpu_custom_call.1']
    #allocation7 [shape = 'u8[8192]{0}', space=vmem, size = 0x2000, scoped, tag = 'input window, operand 2']
    #allocation8 [shape = 'u8[2048]{0}', space=vmem, size = 0x800, scoped, tag = 'output window, operand 0']
    #allocation9 [shape = 'u8[2048]{0}', space=vmem, size = 0x800, scoped, tag = 'output window, operand 1']
    #allocation10 [shape = 's32[2]{0}', space=sflag, size = 0x8, scoped, tag = 'scoped memory for tpu_custom_call.1']
    %10 = vsyncpa [#allocation3], 0
    %s11 = scalar_lea.sflag [#allocation3], 1
    %12 = vsyncpa %s11, 0
    %13 = vsyncpa [#allocation6], 0
    %s14 = scalar_lea.sflag [#allocation6], 1
    %15 = vsyncpa %s14, 0
    %16 = vsyncpa [#allocation4], 0
    %s17 = scalar_lea.sflag [#allocation4], 1
    %18 = vsyncpa %s17, 0
    %19 = vsyncpa [#allocation10], 0
    %s20 = scalar_lea.sflag [#allocation10], 1
    %21 = vsyncpa %s20, 0
    loop: start=0, step=1, limit=4
    $region2: #{tpu_custom_call.1} parent=1 // loop_pre_header
      _
    $region3: #{tpu_custom_call.1} parent=1 // loop_header
      %s23 = sphi 0, %s27
      %p24 = scmp.ge.s32.totalorder %s23, 4
      %s30 = sphi 0, %s42
      %s31 = sphi 0, %s38
      %s32 = sphi 0, %s30
      %s33 = sphi 0, %s31
      %s34 = sphi 0, %s32
      %s35 = sphi 0, %s33
      %s47 = sphi 0, %s49
      %s50 = sphi 0, %s47
      %s51 = sphi 0, %s50
      %s67 = sphi 0, %s51
      %s75 = sphi 0, %s77
      %s78 = sphi 0, %s75
      %s79 = sphi 0, %s78
      %s95 = sphi 0, %s79
      %s103 = sphi 0, %s105
      %s106 = sphi 0, %s103
      %s107 = sphi 0, %s106
      %s123 = sphi 0, %s107
      %s129 = sphi 0, %s131
      %s132 = sphi 0, %s129
      %s133 = sphi 0, %s132
      %s149 = sphi 0, %s133
      %s155 = sphi 0, %s157
      %s158 = sphi 0, %s155
      %s159 = sphi 0, %s158
      %s175 = sphi 0, %s159
    $region4: #{tpu_custom_call.1} parent=1 // loop_header_branch
      %26 = sbr.rel (%p24) target = $region8
    $region5: #{tpu_custom_call.1} parent=1 // loop_body
      %s28 = ssub.s32 %s23, 1
      %s29 = ssub.s32 %s23, 2
      %s36 = sadd.s32 1, %s31
      %p37 = scmp.ge.s32.totalorder %s36, 1
      %s38 = scalar_select %p37, 0, %s36
      %s39 = sadd.s32 1, %s30
      %s40 = scalar_select %p37, %s39, %s30
      %p41 = scmp.ge.s32.totalorder %s40, 2
      %s42 = scalar_select %p41, 0, %s40
      %s43 = ssub.s32 %s30, %s42
      %s44 = ssub.s32 %s31, %s38
      %s45 = sor.u32 %s43, %s44
      %p46 = scmp.eq.s32.totalorder %s45, 0
      %s48 = sadd.s32 %s47, 1
      %s49 = scalar_select %p46, %s47, %s48
      %p52 = pneg %p46
      %p53 = scmp.eq.s32.totalorder %s23, 1
      %p54 = por %p52, %p53
      %p55 = scmp.ne.s32.totalorder %s47, %s50
      %p56 = scmp.eq.s32.totalorder %s23, 0
      %p57 = por %p55, %p56
      %p58 = scmp.ne.s32.totalorder %s47, %s50
      %p59 = scmp.eq.s32.totalorder %s28, 1
      %p60 = por %p58, %p59
      %p61 = scmp.ne.s32.totalorder %s50, %s51
      %p62 = scmp.eq.s32.totalorder %s28, 0
      %p63 = por %p61, %p62
      %p64 = scmp.ne.s32.totalorder %s50, %s51
      %p65 = scmp.eq.s32.totalorder %s29, 1
      %p66 = por %p64, %p65
      %p68 = scmp.ne.s32.totalorder %s51, %s67
      %p69 = scmp.eq.s32.totalorder %s29, 0
      %p70 = por %p68, %p69
      %s71 = ssub.s32 %s30, %s42
      %s72 = ssub.s32 %s31, %s38
      %s73 = sor.u32 %s71, %s72
      %p74 = scmp.eq.s32.totalorder %s73, 0
      %s76 = sadd.s32 %s75, 1
      %s77 = scalar_select %p74, %s75, %s76
      %p80 = pneg %p74
      %p81 = scmp.eq.s32.totalorder %s23, 1
      %p82 = por %p80, %p81
      %p83 = scmp.ne.s32.totalorder %s75, %s78
      %p84 = scmp.eq.s32.totalorder %s23, 0
      %p85 = por %p83, %p84
      %p86 = scmp.ne.s32.totalorder %s75, %s78
      %p87 = scmp.eq.s32.totalorder %s28, 1
      %p88 = por %p86, %p87
      %p89 = scmp.ne.s32.totalorder %s78, %s79
      %p90 = scmp.eq.s32.totalorder %s28, 0
      %p91 = por %p89, %p90
      %p92 = scmp.ne.s32.totalorder %s78, %s79
      %p93 = scmp.eq.s32.totalorder %s29, 1
      %p94 = por %p92, %p93
      %p96 = scmp.ne.s32.totalorder %s79, %s95
      %p97 = scmp.eq.s32.totalorder %s29, 0
      %p98 = por %p96, %p97
      %s99 = ssub.s32 %s30, %s42
      %s100 = ssub.s32 %s31, %s38
      %s101 = sor.u32 %s99, %s100
      %p102 = scmp.eq.s32.totalorder %s101, 0
      %s104 = sadd.s32 %s103, 1
      %s105 = scalar_select %p102, %s103, %s104
      %p108 = pneg %p102
      %p109 = scmp.eq.s32.totalorder %s23, 1
      %p110 = por %p108, %p109
      %p111 = scmp.ne.s32.totalorder %s103, %s106
      %p112 = scmp.eq.s32.totalorder %s23, 0
      %p113 = por %p111, %p112
      %p114 = scmp.ne.s32.totalorder %s103, %s106
      %p115 = scmp.eq.s32.totalorder %s28, 1
      %p116 = por %p114, %p115
      %p117 = scmp.ne.s32.totalorder %s106, %s107
      %p118 = scmp.eq.s32.totalorder %s28, 0
      %p119 = por %p117, %p118
      %p120 = scmp.ne.s32.totalorder %s106, %s107
      %p121 = scmp.eq.s32.totalorder %s29, 1
      %p122 = por %p120, %p121
      %p124 = scmp.ne.s32.totalorder %s107, %s123
      %p125 = scmp.eq.s32.totalorder %s29, 0
      %p126 = por %p124, %p125
      %s127 = ssub.s32 %s30, %s42
      %p128 = scmp.eq.s32.totalorder %s127, 0
      %s130 = sadd.s32 %s129, 1
      %s131 = scalar_select %p128, %s129, %s130
      %p134 = pneg %p128
      %p135 = scmp.eq.s32.totalorder %s23, 1
      %p136 = por %p134, %p135
      %p137 = scmp.ne.s32.totalorder %s129, %s132
      %p138 = scmp.eq.s32.totalorder %s23, 0
      %p139 = por %p137, %p138
      %p140 = scmp.ne.s32.totalorder %s129, %s132
      %p141 = scmp.eq.s32.totalorder %s28, 1
      %p142 = por %p140, %p141
      %p143 = scmp.ne.s32.totalorder %s132, %s133
      %p144 = scmp.eq.s32.totalorder %s28, 0
      %p145 = por %p143, %p144
      %p146 = scmp.ne.s32.totalorder %s132, %s133
      %p147 = scmp.eq.s32.totalorder %s29, 1
      %p148 = por %p146, %p147
      %p150 = scmp.ne.s32.totalorder %s133, %s149
      %p151 = scmp.eq.s32.totalorder %s29, 0
      %p152 = por %p150, %p151
      %s153 = ssub.s32 %s30, %s42
      %p154 = scmp.eq.s32.totalorder %s153, 0
      %s156 = sadd.s32 %s155, 1
      %s157 = scalar_select %p154, %s155, %s156
      %p160 = pneg %p154
      %p161 = scmp.eq.s32.totalorder %s23, 1
      %p162 = por %p160, %p161
      %p163 = scmp.ne.s32.totalorder %s155, %s158
      %p164 = scmp.eq.s32.totalorder %s23, 0
      %p165 = por %p163, %p164
      %p166 = scmp.ne.s32.totalorder %s155, %s158
      %p167 = scmp.eq.s32.totalorder %s28, 1
      %p168 = por %p166, %p167
      %p169 = scmp.ne.s32.totalorder %s158, %s159
      %p170 = scmp.eq.s32.totalorder %s28, 0
      %p171 = por %p169, %p170
      %p172 = scmp.ne.s32.totalorder %s158, %s159
      %p173 = scmp.eq.s32.totalorder %s29, 1
      %p174 = por %p172, %p173
      %p176 = scmp.ne.s32.totalorder %s159, %s175
      %p177 = scmp.eq.s32.totalorder %s29, 0
      %p178 = por %p176, %p177
      %p179 = scmp.le.s32.totalorder 1, %s23
      %p180 = scmp.lt.s32.totalorder %s23, 3
      %p181 = pnand %p179, %p180
      %p182 = pneg %p181
      // Predicated region
      $region9: #{tpu_custom_call.1} parent=5 // pred_check
        _
      $region10: #{tpu_custom_call.1} parent=5 // pred_check_branch
        %184 = sbr.rel (%p181) target = $region12
      $region11: #{tpu_custom_call.1} parent=5 // pred_region
        %s185 = ssub.s32 %s23, 1
      $region12: #{tpu_custom_call.1} parent=5 // pred_fallthru
        _
      %p186 = scmp.lt.s32.totalorder %s23, 2
      // Predicated region
      $region13: #{tpu_custom_call.1} parent=5 // pred_check
        %p187 = pneg %p186
      $region14: #{tpu_custom_call.1} parent=5 // pred_check_branch
        %189 = sbr.rel (%p187) target = $region16
      $region15: #{tpu_custom_call.1} parent=5 // pred_region
        // Predicated region
        $region17: #{tpu_custom_call.1} parent=15 // pred_check
          %p190 = pneg %p57
        $region18: #{tpu_custom_call.1} parent=15 // pred_check_branch
          %192 = sbr.rel (%p190) target = $region20
        $region19: #{tpu_custom_call.1} parent=15 // pred_region
          %s193 = sand.u32 %s47, 1
          %s194 = scalar_lea.sflag [#allocation3], %s193
          %s195 = sand.u32 %s47, 1
          %s196 = smul.addr %s195, 2
          %s197 = scalar_lea.vmem [#allocation2], %s196
          %s198 = smul.u32 2, %s31
          %200 = vsyncadd %s194, 0
          %s201 = smul.addr %s30, 2
          %s202 = sadd.s32 %s198, %s201
          %s203 = scalar_lea.hbm %s0, %s202
          %s205 = sshll.u32 %s203, 4
          %s206 = int_to_ptr.hbm [resolvable:$true] %s205
          %s207 = sshll.u32 %s197, 4
          %s208 = int_to_ptr.vmem [resolvable:$true] %s207
          %210 = dma.hbm_to_vmem [thread:$0]  %s206, 32, %s208, %s194
        $region20: #{tpu_custom_call.1} parent=15 // pred_fallthru
          _
        // Predicated region
        $region21: #{tpu_custom_call.1} parent=15 // pred_check
          %p211 = pneg %p85
        $region22: #{tpu_custom_call.1} parent=15 // pred_check_branch
          %213 = sbr.rel (%p211) target = $region24
        $region23: #{tpu_custom_call.1} parent=15 // pred_region
          %s214 = sand.u32 %s23, 1
          %s215 = scalar_lea.sflag [#allocation6], %s214
          %s216 = sand.u32 %s75, 1
          %s217 = smul.addr %s216, 8
          %s218 = scalar_lea.vmem [#allocation5], %s217
          %s219 = smul.u32 2, %s31
          %221 = vsyncadd %s215, 0
          %s222 = smul.addr %s30, 2
          %s223 = sadd.s32 %s219, %s222
          %s224 = smul.addr %s223, 4
          %s225 = scalar_lea.hbm %s1, %s224
          %s227 = sshll.u32 %s225, 4
          %s228 = int_to_ptr.hbm [resolvable:$true] %s227
          %s229 = sshll.u32 %s218, 4
          %s230 = int_to_ptr.vmem [resolvable:$true] %s229
          %232 = dma.hbm_to_vmem [thread:$0]  %s228, 128, %s230, %s215
        $region24: #{tpu_custom_call.1} parent=15 // pred_fallthru
          _
        // Predicated region
        $region25: #{tpu_custom_call.1} parent=15 // pred_check
          %p233 = pneg %p113
        $region26: #{tpu_custom_call.1} parent=15 // pred_check_branch
          %235 = sbr.rel (%p233) target = $region28
        $region27: #{tpu_custom_call.1} parent=15 // pred_region
          %s236 = sand.u32 %s23, 1
          %s237 = scalar_lea.sflag [#allocation6], %s236
          %s238 = sand.u32 %s103, 1
          %s239 = smul.addr %s238, 8
          %s240 = scalar_lea.vmem [#allocation7], %s239
          %s241 = smul.u32 2, %s31
          %243 = vsyncadd %s237, 0
          %s244 = smul.addr %s30, 2
          %s245 = sadd.s32 %s241, %s244
          %s246 = smul.addr %s245, 4
          %s247 = scalar_lea.hbm %s2, %s246
          %s249 = sshll.u32 %s247, 4
          %s250 = int_to_ptr.hbm [resolvable:$true] %s249
          %s251 = sshll.u32 %s240, 4
          %s252 = int_to_ptr.vmem [resolvable:$true] %s251
          %254 = dma.hbm_to_vmem [thread:$0]  %s250, 128, %s252, %s237
        $region28: #{tpu_custom_call.1} parent=15 // pred_fallthru
          _
      $region16: #{tpu_custom_call.1} parent=5 // pred_fallthru
        _
      %p255 = scmp.le.s32.totalorder 1, %s23
      %p256 = scmp.lt.s32.totalorder %s23, 3
      %p257 = pnand %p255, %p256
      %p258 = pneg %p257
      // Predicated region
      $region29: #{tpu_custom_call.1} parent=5 // pred_check
        _
      $region30: #{tpu_custom_call.1} parent=5 // pred_check_branch
        %260 = sbr.rel (%p257) target = $region32
      $region31: #{tpu_custom_call.1} parent=5 // pred_region
        %s261 = ssub.s32 %s23, 1
        %s262 = sand.u32 %s50, 1
        %s263 = scalar_lea.sflag [#allocation3], %s262
        %s264 = sand.u32 %s50, 1
        %s265 = smul.addr %s264, 2
        %s266 = scalar_lea.vmem [#allocation2], %s265
        // Predicated region
        $region33: #{tpu_custom_call.1} parent=31 // pred_check
          %p267 = pneg %p63
        $region34: #{tpu_custom_call.1} parent=31 // pred_check_branch
          %269 = sbr.rel (%p267) target = $region36
        $region35: #{tpu_custom_call.1} parent=31 // pred_region
          %271 = dma.done %s263, 32
        $region36: #{tpu_custom_call.1} parent=31 // pred_fallthru
          _
        %s272 = sand.u32 %s28, 1
        %s273 = scalar_lea.sflag [#allocation6], %s272
        %s274 = sand.u32 %s78, 1
        %s275 = smul.addr %s274, 8
        %s276 = scalar_lea.vmem [#allocation5], %s275
        // Predicated region
        $region37: #{tpu_custom_call.1} parent=31 // pred_check
          %p277 = pneg %p91
        $region38: #{tpu_custom_call.1} parent=31 // pred_check_branch
          %279 = sbr.rel (%p277) target = $region40
        $region39: #{tpu_custom_call.1} parent=31 // pred_region
          %281 = dma.done %s273, 128
        $region40: #{tpu_custom_call.1} parent=31 // pred_fallthru
          _
        %s282 = sand.u32 %s28, 1
        %s283 = scalar_lea.sflag [#allocation6], %s282
        %s284 = sand.u32 %s106, 1
        %s285 = smul.addr %s284, 8
        %s286 = scalar_lea.vmem [#allocation7], %s285
        // Predicated region
        $region41: #{tpu_custom_call.1} parent=31 // pred_check
          %p287 = pneg %p119
        $region42: #{tpu_custom_call.1} parent=31 // pred_check_branch
          %289 = sbr.rel (%p287) target = $region44
        $region43: #{tpu_custom_call.1} parent=31 // pred_region
          %291 = dma.done %s283, 128
        $region44: #{tpu_custom_call.1} parent=31 // pred_fallthru
          _
        %s292 = sand.u32 %s50, 1
        %s293 = scalar_lea.sflag [#allocation3], %s292
        %s294 = sand.u32 %s50, 1
        %s295 = smul.addr %s294, 2
        %s296 = scalar_lea.vmem [#allocation2], %s295
        %p297 = pneg %p63
        %p298 = pneg %p60
        %s299 = sand.u32 %s28, 1
        %s300 = scalar_lea.sflag [#allocation6], %s299
        %s301 = sand.u32 %s78, 1
        %s302 = smul.addr %s301, 8
        %s303 = scalar_lea.vmem [#allocation5], %s302
        %p304 = pneg %p91
        %p305 = pneg %p88
        %s306 = sand.u32 %s28, 1
        %s307 = scalar_lea.sflag [#allocation6], %s306
        %s308 = sand.u32 %s106, 1
        %s309 = smul.addr %s308, 8
        %s310 = scalar_lea.vmem [#allocation7], %s309
        %p311 = pneg %p119
        %p312 = pneg %p116
        %p313 = pneg %p145
        %p314 = pneg %p142
        %s315 = sand.u32 %s132, 1
        %s316 = scalar_lea.sflag [#allocation4], %s315
        %s317 = sand.u32 %s132, 1
        %s318 = smul.addr %s317, 2
        %s319 = scalar_lea.vmem [#allocation8], %s318
        %p320 = pneg %p171
        %p321 = pneg %p168
        %s322 = sand.u32 %s158, 1
        %s323 = scalar_lea.sflag [#allocation10], %s322
        %s324 = sand.u32 %s158, 1
        %s325 = smul.addr %s324, 2
        %s326 = scalar_lea.vmem [#allocation9], %s325
        %s327 = smul.u32 2, %s33
        %s328 = smul.u32 2, %s33
        %s329 = smul.u32 2, %s33
        %v330 = vld [vmem:[%s266] sm:$0x3]
        %p331 = scmp.eq.s32.totalorder %s33, 0
        // Predicated region
        $region45: #{tpu_custom_call.1} parent=31 // pred_check
          %p332 = pneg %p331
        $region46: #{tpu_custom_call.1} parent=31 // pred_check_branch
          %334 = sbr.rel (%p332) target = $region48
        $region47: #{tpu_custom_call.1} parent=31 // pred_region
          %v335 = vlaneseq
          %vm336 = vcmp.ge.s32.totalorder %v335, 0
          %vm337 = vcmp.lt.s32.totalorder %v335, 256
          %vm338 = vmand %vm336, %vm337
          %339 = vst.msk [vmem:[%s319] sm:$0x3] %vm338, 0.0
          %340 = vst.msk [vmem:[%s326] sm:$0x3] %vm338, 0.0
        $region48: #{tpu_custom_call.1} parent=31 // pred_fallthru
          _
        %v341 = vld [vmem:[%s276] sm:$0xff]
        %343 = vst [vmem:[#allocation1] ss:$2 sm:$0xff] %v341
        %v344 = vld.sshfl [vmem:[#allocation1] sm:$0xff pattern:$0x75316420]
        %v345 = vld.sshfl [vmem:[#allocation1 + $0x8] sm:$0xff pattern:$0x75316420]
        %vm348 = vcmask 1043456
        %v349 = vsel %vm348, %v344, -inf
        %v350 = vrot.slane %v349, 4
        %v351 = vmax.f32 %v349, %v350
        %v352 = vrot.slane %v351, 2
        %v353 = vmax.f32 %v351, %v352
        %v354 = vrot.slane %v353, 1
        %v355 = vmax.f32 %v353, %v354
        %v356 = vsel %vm348, %v345, -inf
        %v357 = vrot.slane %v356, 4
        %v358 = vmax.f32 %v356, %v357
        %v359 = vrot.slane %v358, 2
        %v360 = vmax.f32 %v358, %v359
        %v361 = vrot.slane %v360, 1
        %v362 = vmax.f32 %v360, %v361
        %v365 = vrot.slane %v362, 4
        %v366 = vsel %vm348, %v355, %v365
        %v368 = vsub.f32 %v341, %v366
        %v369 = vmul.f32 %v368, 1.442695
        %v370 = vpow.pop %v369
        %372 = vst [vmem:[#allocation1] ss:$2 sm:$0xff] %v370
        %v373 = vld.sshfl [vmem:[#allocation1] sm:$0xff pattern:$0x75316420]
        %v374 = vld.sshfl [vmem:[#allocation1 + $0x8] sm:$0xff pattern:$0x75316420]
        %v377 = vsel %vm348, %v373, 0.0
        %v378 = vrot.slane %v377, 4
        %v379 = vadd.f32 %v377, %v378
        %v380 = vrot.slane %v379, 2
        %v381 = vadd.f32 %v379, %v380
        %v382 = vrot.slane %v381, 1
        %v383 = vadd.f32 %v381, %v382
        %v384 = vsel %vm348, %v374, 0.0
        %v385 = vrot.slane %v384, 4
        %v386 = vadd.f32 %v384, %v385
        %v387 = vrot.slane %v386, 2
        %v388 = vadd.f32 %v386, %v387
        %v389 = vrot.slane %v388, 1
        %v390 = vadd.f32 %v388, %v389
        %v391 = vlog2.pop %v383
        %v392 = vmul.f32 %v391, 0.6931472
        %v393 = vlog2.pop %v390
        %v394 = vmul.f32 %v393, 0.6931472
        %v395 = vadd.f32 %v355, %v392
        %v396 = vadd.f32 %v362, %v394
        %v397 = vlaneseq
        %v398 = vshrl.u32 %v397, 7
        %v399 = vperm.slane %v330, 0
        %v400 = vperm.slane %v330, 1
        %vm401 = vcmp.eq.s32.totalorder %v398, %v399
        %vm402 = vcmp.eq.s32.totalorder %v398, %v400
        %v403 = vsel %vm401, 1, 0
        %v404 = vsel %vm402, 1, 0
        %v405 = vcvt.s32.f32 %v403
        %v406 = vcvt.s32.f32 %v404
        %v409 = vrot.slane %v406, 4
        %v410 = vsel %vm348, %v405, %v409
        %v412 = vmul.f32 %v341, %v410
        %414 = vst [vmem:[#allocation1] ss:$2 sm:$0xff] %v412
        %v415 = vld.sshfl [vmem:[#allocation1] sm:$0xff pattern:$0x75316420]
        %v416 = vld.sshfl [vmem:[#allocation1 + $0x8] sm:$0xff pattern:$0x75316420]
        %v419 = vsel %vm348, %v415, 0.0
        %v420 = vrot.slane %v419, 4
        %v421 = vadd.f32 %v419, %v420
        %v422 = vrot.slane %v421, 2
        %v423 = vadd.f32 %v421, %v422
        %v424 = vrot.slane %v423, 1
        %v425 = vadd.f32 %v423, %v424
        %v426 = vsel %vm348, %v416, 0.0
        %v427 = vrot.slane %v426, 4
        %v428 = vadd.f32 %v426, %v427
        %v429 = vrot.slane %v428, 2
        %v430 = vadd.f32 %v428, %v429
        %v431 = vrot.slane %v430, 1
        %v432 = vadd.f32 %v430, %v431
        %v433 = vld [vmem:[%s319] sm:$0x3]
        %v434 = vsub.f32 %v395, %v425
        %v435 = vsub.f32 %v396, %v432
        %v438 = vrot.slane %v435, 7
        %vm439 = vcmask 1040384
        %v440 = vsel %vm439, %v434, %v438
        %v442 = vadd.f32 %v433, %v440
        %v443 = vlaneseq
        %vm444 = vcmp.ge.s32.totalorder %v443, 0
        %vm445 = vcmp.lt.s32.totalorder %v443, 256
        %vm446 = vmand %vm444, %vm445
        %447 = vst.msk [vmem:[%s319] sm:$0x3] %vm446, %v442
        %v448 = vld [vmem:[%s286] sm:$0xff]
        %450 = vst [vmem:[#allocation1] ss:$2 sm:$0xff] %v448
        %v451 = vld.sshfl [vmem:[#allocation1] sm:$0xff pattern:$0x75316420]
        %v452 = vld.sshfl [vmem:[#allocation1 + $0x8] sm:$0xff pattern:$0x75316420]
        %v455 = vsel %vm348, %v451, -inf
        %v456 = vrot.slane %v455, 4
        %v457 = vmax.f32 %v455, %v456
        %v458 = vrot.slane %v457, 2
        %v459 = vmax.f32 %v457, %v458
        %v460 = vrot.slane %v459, 1
        %v461 = vmax.f32 %v459, %v460
        %v462 = vsel %vm348, %v452, -inf
        %v463 = vrot.slane %v462, 4
        %v464 = vmax.f32 %v462, %v463
        %v465 = vrot.slane %v464, 2
        %v466 = vmax.f32 %v464, %v465
        %v467 = vrot.slane %v466, 1
        %v468 = vmax.f32 %v466, %v467
        %v471 = vrot.slane %v468, 4
        %v472 = vsel %vm348, %v461, %v471
        %v474 = vsub.f32 %v448, %v472
        %v475 = vmul.f32 %v474, 1.442695
        %v476 = vpow.pop %v475
        %478 = vst [vmem:[#allocation1] ss:$2 sm:$0xff] %v476
        %v479 = vld.sshfl [vmem:[#allocation1] sm:$0xff pattern:$0x75316420]
        %v480 = vld.sshfl [vmem:[#allocation1 + $0x8] sm:$0xff pattern:$0x75316420]
        %v483 = vsel %vm348, %v479, 0.0
        %v484 = vrot.slane %v483, 4
        %v485 = vadd.f32 %v483, %v484
        %v486 = vrot.slane %v485, 2
        %v487 = vadd.f32 %v485, %v486
        %v488 = vrot.slane %v487, 1
        %v489 = vadd.f32 %v487, %v488
        %v490 = vsel %vm348, %v480, 0.0
        %v491 = vrot.slane %v490, 4
        %v492 = vadd.f32 %v490, %v491
        %v493 = vrot.slane %v492, 2
        %v494 = vadd.f32 %v492, %v493
        %v495 = vrot.slane %v494, 1
        %v496 = vadd.f32 %v494, %v495
        %v497 = vlog2.pop %v489
        %v498 = vmul.f32 %v497, 0.6931472
        %v499 = vlog2.pop %v496
        %v500 = vmul.f32 %v499, 0.6931472
        %v501 = vadd.f32 %v461, %v498
        %v502 = vadd.f32 %v468, %v500
        %v503 = vmul.f32 %v448, %v410
        %505 = vst [vmem:[#allocation1] ss:$2 sm:$0xff] %v503
        %v506 = vld.sshfl [vmem:[#allocation1] sm:$0xff pattern:$0x75316420]
        %v507 = vld.sshfl [vmem:[#allocation1 + $0x8] sm:$0xff pattern:$0x75316420]
        %v510 = vsel %vm348, %v506, 0.0
        %v511 = vrot.slane %v510, 4
        %v512 = vadd.f32 %v510, %v511
        %v513 = vrot.slane %v512, 2
        %v514 = vadd.f32 %v512, %v513
        %v515 = vrot.slane %v514, 1
        %v516 = vadd.f32 %v514, %v515
        %v517 = vsel %vm348, %v507, 0.0
        %v518 = vrot.slane %v517, 4
        %v519 = vadd.f32 %v517, %v518
        %v520 = vrot.slane %v519, 2
        %v521 = vadd.f32 %v519, %v520
        %v522 = vrot.slane %v521, 1
        %v523 = vadd.f32 %v521, %v522
        %v524 = vld [vmem:[%s326] sm:$0x3]
        %v525 = vsub.f32 %v501, %v516
        %v526 = vsub.f32 %v502, %v523
        %v529 = vrot.slane %v526, 7
        %v530 = vsel %vm439, %v525, %v529
        %v532 = vadd.f32 %v524, %v530
        %533 = vst.msk [vmem:[%s326] sm:$0x3] %vm446, %v532
        %s534 = sand.u32 %s132, 1
        %s535 = scalar_lea.sflag [#allocation4], %s534
        %s536 = sand.u32 %s132, 1
        %s537 = smul.addr %s536, 2
        %s538 = scalar_lea.vmem [#allocation8], %s537
        %s539 = sand.u32 %s158, 1
        %s540 = scalar_lea.sflag [#allocation10], %s539
        %s541 = sand.u32 %s158, 1
        %s542 = smul.addr %s541, 2
        %s543 = scalar_lea.vmem [#allocation9], %s542
        // Predicated region
        $region49: #{tpu_custom_call.1} parent=31 // pred_check
          %p544 = pneg %p142
        $region50: #{tpu_custom_call.1} parent=31 // pred_check_branch
          %546 = sbr.rel (%p544) target = $region52
        $region51: #{tpu_custom_call.1} parent=31 // pred_region
          %548 = vsyncadd %s535, 0
          %s549 = smul.addr %s32, 2
          %s550 = scalar_lea.hbm %s3, %s549
          %s552 = sshll.u32 %s538, 4
          %s553 = int_to_ptr.vmem [resolvable:$true] %s552
          %s554 = sshll.u32 %s550, 4
          %s555 = int_to_ptr.hbm [resolvable:$true] %s554
          %557 = dma.vmem_to_hbm [thread:$0]  %s553, 32, %s555, %s535
        $region52: #{tpu_custom_call.1} parent=31 // pred_fallthru
          _
        // Predicated region
        $region53: #{tpu_custom_call.1} parent=31 // pred_check
          %p558 = pneg %p168
        $region54: #{tpu_custom_call.1} parent=31 // pred_check_branch
          %560 = sbr.rel (%p558) target = $region56
        $region55: #{tpu_custom_call.1} parent=31 // pred_region
          %562 = vsyncadd %s540, 0
          %s563 = smul.addr %s32, 2
          %s564 = scalar_lea.hbm %s4, %s563
          %s566 = sshll.u32 %s543, 4
          %s567 = int_to_ptr.vmem [resolvable:$true] %s566
          %s568 = sshll.u32 %s564, 4
          %s569 = int_to_ptr.hbm [resolvable:$true] %s568
          %571 = dma.vmem_to_hbm [thread:$0]  %s567, 32, %s569, %s540
        $region56: #{tpu_custom_call.1} parent=31 // pred_fallthru
          _
      $region32: #{tpu_custom_call.1} parent=5 // pred_fallthru
        _
      %p572 = scmp.le.s32.totalorder 2, %s23
      // Predicated region
      $region57: #{tpu_custom_call.1} parent=5 // pred_check
        %p573 = pneg %p572
      $region58: #{tpu_custom_call.1} parent=5 // pred_check_branch
        %575 = sbr.rel (%p573) target = $region60
      $region59: #{tpu_custom_call.1} parent=5 // pred_region
        %s576 = ssub.s32 %s23, 2
        // Predicated region
        $region61: #{tpu_custom_call.1} parent=59 // pred_check
          %p577 = pneg %p148
        $region62: #{tpu_custom_call.1} parent=59 // pred_check_branch
          %579 = sbr.rel (%p577) target = $region64
        $region63: #{tpu_custom_call.1} parent=59 // pred_region
          %s580 = sand.u32 %s133, 1
          %s581 = scalar_lea.sflag [#allocation4], %s580
          %s582 = sand.u32 %s133, 1
          %s583 = smul.addr %s582, 2
          %s584 = scalar_lea.vmem [#allocation8], %s583
          %586 = dma.done %s581, 32
        $region64: #{tpu_custom_call.1} parent=59 // pred_fallthru
          _
        // Predicated region
        $region65: #{tpu_custom_call.1} parent=59 // pred_check
          %p587 = pneg %p174
        $region66: #{tpu_custom_call.1} parent=59 // pred_check_branch
          %589 = sbr.rel (%p587) target = $region68
        $region67: #{tpu_custom_call.1} parent=59 // pred_region
          %s590 = sand.u32 %s159, 1
          %s591 = scalar_lea.sflag [#allocation10], %s590
          %s592 = sand.u32 %s159, 1
          %s593 = smul.addr %s592, 2
          %s594 = scalar_lea.vmem [#allocation9], %s593
          %596 = dma.done %s591, 32
        $region68: #{tpu_custom_call.1} parent=59 // pred_fallthru
          _
      $region60: #{tpu_custom_call.1} parent=5 // pred_fallthru
        _
    $region6: #{tpu_custom_call.1} parent=1 // loop_footer
      %s27 = sadd.s32 1, %s23
    $region7: #{tpu_custom_call.1} parent=1 // loop_footer_branch
      %22 = sbr.rel target = $region3
    $region8: #{tpu_custom_call.1} parent=1 // loop_exit
      _
    %597 = vsyncpa [#allocation3], 1
    %s598 = scalar_lea.sflag [#allocation3], 1
    %599 = vsyncpa %s598, 1
    %600 = vsyncpa [#allocation6], 1
    %s601 = scalar_lea.sflag [#allocation6], 1
    %602 = vsyncpa %s601, 1
    %603 = vsyncpa [#allocation4], 1
    %s604 = scalar_lea.sflag [#allocation4], 1
    %605 = vsyncpa %s604, 1
    %606 = vsyncpa [#allocation10], 1
    %s607 = scalar_lea.sflag [#allocation10], 1
    %608 = vsyncpa %s607, 1

</llo_original>
